<compile_context>
chip_gen: v7x
topology: tpu7x:2x2x1
jax: 0.10.0
libtpu: 0.0.40
codegen_flags: <defaults>
</compile_context>

<pallas_src>
import jax
import jax.numpy as jnp
from jax.experimental import pallas as pl
from jax.experimental.pallas import tpu as pltpu

H1, H2, H3 = 128, 256, 128        # hidden sizes of fc1/fc2/fc3
LANE = 128                        # TPU lane width (output padded to this)


def matrixnet_kernel(x_ref,
                     w1_ref, b1_ref,
                     w2_ref, b2_ref,
                     w3_ref, b3_ref,
                     w4_ref, b4_ref,
                     o_ref):
    # Every matmul: bf16 x bf16 -> f32 accumulate on the MXU.
    # Bias-add + ReLU (f32, VPU) is fused with the bf16 downcast so the
    # materialized inter-layer intermediates are bf16.
    h = jnp.dot(x_ref[...].astype(jnp.bfloat16), w1_ref[...],
                preferred_element_type=jnp.float32)
    h = jnp.maximum(h + b1_ref[...], 0.0).astype(jnp.bfloat16)

    h = jnp.dot(h, w2_ref[...], preferred_element_type=jnp.float32)
    h = jnp.maximum(h + b2_ref[...], 0.0).astype(jnp.bfloat16)

    h = jnp.dot(h, w3_ref[...], preferred_element_type=jnp.float32)
    h = jnp.maximum(h + b3_ref[...], 0.0).astype(jnp.bfloat16)

    # w4/b4 are lane-padded to 128 output columns (extra cols are zero).
    h = jnp.dot(h, w4_ref[...], preferred_element_type=jnp.float32)
    o_ref[...] = (h + b4_ref[...]).astype(o_ref.dtype)


def _round_up(x, m):
    return ((x + m - 1) // m) * m


def _choose_tiling(batch, *, max_tile=4096, single_tile_max=512):
    """Fewest grid steps possible; even step count when >1 so v7x's two
    TensorCores stay balanced under dimension_semantics=("parallel",)."""
    if batch <= single_tile_max:
        tile_m = max(16, _round_up(batch, 16))   # bf16 sublane quantum
        return tile_m, 1
    n_tiles = max(2, pl.cdiv(batch, max_tile))
    if n_tiles % 2:
        n_tiles += 1                             # even split for v7x megacore
    tile_m = _round_up(pl.cdiv(batch, n_tiles), 16)
    return tile_m, n_tiles


def matrixnet_forward(x, params, *, tile_m=None):
    """x: [B, input_size] float32. params: w1..w4 stored as (in, out) bf16,
    b1..b4 as (1, out) f32 (PyTorch's (out, in) weight, pre-transposed)."""
    B, D = x.shape
    if tile_m is None:
        tile_m, n_tiles = _choose_tiling(B)
    else:
        n_tiles = pl.cdiv(B, tile_m)

    b_pad = n_tiles * tile_m
    if b_pad != B:
        x = jnp.pad(x, ((0, b_pad - B), (0, 0)))

    w1, b1 = params["w1"], params["b1"]
    w2, b2 = params["w2"], params["b2"]
    w3, b3 = params["w3"], params["b3"]
    w4, b4 = params["w4"], params["b4"]

    # Lane-dense output path: pad fc4's output dim D -> D_pad (multiple of 128)
    # with zero columns; the padded matmul columns are free (MXU is idle at N=32)
    # and the store becomes an unmasked full-lane vst.
    d_pad = _round_up(D, LANE)
    if d_pad != D:
        w4 = jnp.pad(w4, ((0, 0), (0, d_pad - D)))
        b4 = jnp.pad(b4, ((0, 0), (0, d_pad - D)))

    # Advisory cost hint for XLA's scheduler around the custom call.
    flops = 2 * b_pad * (D * H1 + H1 * H2 + H2 * H3 + H3 * d_pad)
    param_bytes = sum(int(p.size) * p.dtype.itemsize
                      for p in (w1, b1, w2, b2, w3, b3, w4, b4))
    bytes_accessed = (b_pad * D * x.dtype.itemsize          # x in
                      + b_pad * d_pad * x.dtype.itemsize    # padded out
                      + param_bytes)
    cost = pl.CostEstimate(flops=flops, transcendentals=0,
                           bytes_accessed=bytes_accessed)

    def resident(arr):
        # Fully-resident 2D parameter: same block every grid step.
        return pl.BlockSpec(arr.shape, lambda i: (0, 0))

    out = pl.pallas_call(
        matrixnet_kernel,
        out_shape=jax.ShapeDtypeStruct((b_pad, d_pad), x.dtype),
        grid_spec=pltpu.PrefetchScalarGridSpec(
            num_scalar_prefetch=0,
            grid=(n_tiles,),
            in_specs=[
                pl.BlockSpec((tile_m, D), lambda i: (i, 0)),      # x tile
                resident(w1), resident(b1),
                resident(w2), resident(b2),
                resident(w3), resident(b3),
                resident(w4), resident(b4),
            ],
            out_specs=pl.BlockSpec((tile_m, d_pad), lambda i: (i, 0)),
        ),
        compiler_params=pltpu.CompilerParams(
            dimension_semantics=("parallel",),
            # Explicit headroom for tile_m up to 4096 (~15-20 MiB peak per step);
            # stays below v7x's 64 MiB physical VMEM.
            vmem_limit_bytes=48 * 1024 * 1024,
        ),
        cost_estimate=cost,
    )(x, w1, b1, w2, b2, w3, b3, w4, b4)

    return out[:B, :D]


def init_params(key, input_size):
    """Deterministic init mirroring nn.Linear shapes/bounds; weights stored
    pre-transposed as (in, out) and cast to bf16 for the MXU, biases f32."""
    dims = [(input_size, H1), (H1, H2), (H2, H3), (H3, input_size)]
    params = {}
    for idx, (fan_in, fan_out) in enumerate(dims, start=1):
        key, kw, kb = jax.random.split(key, 3)
        bound = 1.0 / (fan_in ** 0.5)  # nn.Linear default uniform bound
        w = jax.random.uniform(kw, (fan_in, fan_out), jnp.float32,
                               minval=-bound, maxval=bound)
        b = jax.random.uniform(kb, (1, fan_out), jnp.float32,
                               minval=-bound, maxval=bound)
        params[f"w{idx}"] = w.astype(jnp.bfloat16)
        params[f"b{idx}"] = b
    return params


def matrixnet_reference(x, params):
    """Pure-JAX reference using the same bf16-feed / f32-accumulate scheme."""
    def layer(h, w, b, relu):
        y = jnp.dot(h.astype(jnp.bfloat16), w,
                    preferred_element_type=jnp.float32) + b
        if relu:
            y = jnp.maximum(y, 0.0).astype(jnp.bfloat16)
        return y
    h = layer(x, params["w1"], params["b1"], True)
    h = layer(h, params["w2"], params["b2"], True)
    h = layer(h, params["w3"], params["b3"], True)
    return layer(h, params["w4"], params["b4"], False)


if __name__ == "__main__":
    input_size = 32
    key = jax.random.PRNGKey(0)
    key, kp = jax.random.split(key)
    params = init_params(kp, input_size)

    # Two paths:
    #   batch=8    -> single padded 16-row tile (small-batch path)
    #   batch=1024 -> even 2-step grid (512-row tiles): exercises BlockSpec
    #                 pipelining and the v7x dual-TensorCore split.
    for batch in (8, 1024):
        key, kx = jax.random.split(key)
        x = jax.random.normal(kx, (batch, input_size), jnp.float32)

        out = jax.block_until_ready(matrixnet_forward(x, params))
        ref = matrixnet_reference(x, params)

        assert out.shape == (batch, input_size), out.shape
        assert jnp.allclose(out, ref, atol=5e-3, rtol=5e-3), \
            f"mismatch vs reference at batch={batch}"

    print("KERNEL_OK")
</pallas_src>

<mosaic_0001>
module attributes {stable_mosaic.version = 11 : i64} {
  func.func @matrixnet_kernel(%arg0: i32, %arg1: memref<16x32xf32, #tpu.memory_space<vmem>>, %arg2: memref<32x128xbf16, #tpu.memory_space<vmem>>, %arg3: memref<1x128xf32, #tpu.memory_space<vmem>>, %arg4: memref<128x256xbf16, #tpu.memory_space<vmem>>, %arg5: memref<1x256xf32, #tpu.memory_space<vmem>>, %arg6: memref<256x128xbf16, #tpu.memory_space<vmem>>, %arg7: memref<1x128xf32, #tpu.memory_space<vmem>>, %arg8: memref<128x128xbf16, #tpu.memory_space<vmem>>, %arg9: memref<1x128xf32, #tpu.memory_space<vmem>>, %arg10: memref<16x128xf32, #tpu.memory_space<vmem>>) attributes {dimension_semantics = [#tpu.dimension_semantics<parallel>], iteration_bounds = array<i64: 1>, scalar_prefetch = 0 : i64, scratch_operands = 0 : i64, tpu.core_type = #tpu.core_type<tc>, window_params = [{transform_indices = @transform_0, window_bounds = array<i64: 16, 32>}, {pipeline_mode = #tpu.pipeline_mode<synchronous>, transform_indices = @transform_1, window_bounds = array<i64: 32, 128>}, {pipeline_mode = #tpu.pipeline_mode<synchronous>, transform_indices = @transform_2, window_bounds = array<i64: 1, 128>}, {pipeline_mode = #tpu.pipeline_mode<synchronous>, transform_indices = @transform_3, window_bounds = array<i64: 128, 256>}, {pipeline_mode = #tpu.pipeline_mode<synchronous>, transform_indices = @transform_4, window_bounds = array<i64: 1, 256>}, {pipeline_mode = #tpu.pipeline_mode<synchronous>, transform_indices = @transform_5, window_bounds = array<i64: 256, 128>}, {pipeline_mode = #tpu.pipeline_mode<synchronous>, transform_indices = @transform_6, window_bounds = array<i64: 1, 128>}, {pipeline_mode = #tpu.pipeline_mode<synchronous>, transform_indices = @transform_7, window_bounds = array<i64: 128, 128>}, {pipeline_mode = #tpu.pipeline_mode<synchronous>, transform_indices = @transform_8, window_bounds = array<i64: 1, 128>}, {transform_indices = @transform_9, window_bounds = array<i64: 16, 128>}]} {
    %c0 = arith.constant 0 : index
    %c0_0 = arith.constant 0 : index
    %0 = vector.load %arg1[%c0, %c0_0] : memref<16x32xf32, #tpu.memory_space<vmem>>, vector<16x32xf32>
    %1 = arith.truncf %0 : vector<16x32xf32> to vector<16x32xbf16>
    %c0_1 = arith.constant 0 : index
    %c0_2 = arith.constant 0 : index
    %2 = vector.load %arg2[%c0_1, %c0_2] : memref<32x128xbf16, #tpu.memory_space<vmem>>, vector<32x128xbf16>
    %cst = arith.constant dense<0.000000e+00> : vector<16x128xf32>
    %3 = tpu.matmul %1, %2, %cst {dimension_numbers = #tpu.dot_dimension_numbers<[1], [0], [0], [1], [0, 0, 1, 1], [], []>} : vector<16x32xbf16>, vector<32x128xbf16>, vector<16x128xf32> -> vector<16x128xf32>
    %c0_3 = arith.constant 0 : index
    %c0_4 = arith.constant 0 : index
    %4 = vector.load %arg3[%c0_3, %c0_4] : memref<1x128xf32, #tpu.memory_space<vmem>>, vector<1x128xf32>
    %5 = vector.broadcast %4 : vector<1x128xf32> to vector<16x128xf32>
    %6 = arith.addf %3, %5 : vector<16x128xf32>
    %cst_5 = arith.constant 0.000000e+00 : f32
    %7 = vector.broadcast %cst_5 : f32 to vector<16x128xf32>
    %8 = arith.maximumf %6, %7 : vector<16x128xf32>
    %9 = arith.truncf %8 : vector<16x128xf32> to vector<16x128xbf16>
    %c0_6 = arith.constant 0 : index
    %c0_7 = arith.constant 0 : index
    %10 = vector.load %arg4[%c0_6, %c0_7] : memref<128x256xbf16, #tpu.memory_space<vmem>>, vector<128x256xbf16>
    %cst_8 = arith.constant dense<0.000000e+00> : vector<16x256xf32>
    %11 = tpu.matmul %9, %10, %cst_8 {dimension_numbers = #tpu.dot_dimension_numbers<[1], [0], [0], [1], [0, 0, 1, 1], [], []>} : vector<16x128xbf16>, vector<128x256xbf16>, vector<16x256xf32> -> vector<16x256xf32>
    %c0_9 = arith.constant 0 : index
    %c0_10 = arith.constant 0 : index
    %12 = vector.load %arg5[%c0_9, %c0_10] : memref<1x256xf32, #tpu.memory_space<vmem>>, vector<1x256xf32>
    %13 = vector.broadcast %12 : vector<1x256xf32> to vector<16x256xf32>
    %14 = arith.addf %11, %13 : vector<16x256xf32>
    %cst_11 = arith.constant 0.000000e+00 : f32
    %15 = vector.broadcast %cst_11 : f32 to vector<16x256xf32>
    %16 = arith.maximumf %14, %15 : vector<16x256xf32>
    %17 = arith.truncf %16 : vector<16x256xf32> to vector<16x256xbf16>
    %c0_12 = arith.constant 0 : index
    %c0_13 = arith.constant 0 : index
    %18 = vector.load %arg6[%c0_12, %c0_13] : memref<256x128xbf16, #tpu.memory_space<vmem>>, vector<256x128xbf16>
    %cst_14 = arith.constant dense<0.000000e+00> : vector<16x128xf32>
    %19 = tpu.matmul %17, %18, %cst_14 {dimension_numbers = #tpu.dot_dimension_numbers<[1], [0], [0], [1], [0, 0, 1, 1], [], []>} : vector<16x256xbf16>, vector<256x128xbf16>, vector<16x128xf32> -> vector<16x128xf32>
    %c0_15 = arith.constant 0 : index
    %c0_16 = arith.constant 0 : index
    %20 = vector.load %arg7[%c0_15, %c0_16] : memref<1x128xf32, #tpu.memory_space<vmem>>, vector<1x128xf32>
    %21 = vector.broadcast %20 : vector<1x128xf32> to vector<16x128xf32>
    %22 = arith.addf %19, %21 : vector<16x128xf32>
    %cst_17 = arith.constant 0.000000e+00 : f32
    %23 = vector.broadcast %cst_17 : f32 to vector<16x128xf32>
    %24 = arith.maximumf %22, %23 : vector<16x128xf32>
    %25 = arith.truncf %24 : vector<16x128xf32> to vector<16x128xbf16>
    %c0_18 = arith.constant 0 : index
    %c0_19 = arith.constant 0 : index
    %26 = vector.load %arg8[%c0_18, %c0_19] : memref<128x128xbf16, #tpu.memory_space<vmem>>, vector<128x128xbf16>
    %cst_20 = arith.constant dense<0.000000e+00> : vector<16x128xf32>
    %27 = tpu.matmul %25, %26, %cst_20 {dimension_numbers = #tpu.dot_dimension_numbers<[1], [0], [0], [1], [0, 0, 1, 1], [], []>} : vector<16x128xbf16>, vector<128x128xbf16>, vector<16x128xf32> -> vector<16x128xf32>
    %c0_21 = arith.constant 0 : index
    %c0_22 = arith.constant 0 : index
    %28 = vector.load %arg9[%c0_21, %c0_22] : memref<1x128xf32, #tpu.memory_space<vmem>>, vector<1x128xf32>
    %29 = vector.broadcast %28 : vector<1x128xf32> to vector<16x128xf32>
    %30 = arith.addf %27, %29 : vector<16x128xf32>
    %c0_23 = arith.constant 0 : index
    %c0_24 = arith.constant 0 : index
    %31 = vector.load %arg10[%c0_23, %c0_24] : memref<16x128xf32, #tpu.memory_space<vmem>>, vector<16x128xf32>
    tpu.vector_store %arg10[%c0_23, %c0_24], %30 {strides = array<i32>} : memref<16x128xf32, #tpu.memory_space<vmem>>, vector<16x128xf32>,
    return
  }
  func.func @transform_0(%arg0: i32) -> (i32, i32) {
    %c0_i32 = arith.constant 0 : i32
    %c0_i32_0 = arith.constant 0 : i32
    return %arg0, %c0_i32 : i32, i32
  }
  func.func @transform_1(%arg0: i32) -> (i32, i32) {
    %c0_i32 = arith.constant 0 : i32
    %c0_i32_0 = arith.constant 0 : i32
    %c0_i32_1 = arith.constant 0 : i32
    return %c0_i32, %c0_i32_0 : i32, i32
  }
  func.func @transform_2(%arg0: i32) -> (i32, i32) {
    %c0_i32 = arith.constant 0 : i32
    %c0_i32_0 = arith.constant 0 : i32
    %c0_i32_1 = arith.constant 0 : i32
    return %c0_i32, %c0_i32_0 : i32, i32
  }
  func.func @transform_3(%arg0: i32) -> (i32, i32) {
    %c0_i32 = arith.constant 0 : i32
    %c0_i32_0 = arith.constant 0 : i32
    %c0_i32_1 = arith.constant 0 : i32
    return %c0_i32, %c0_i32_0 : i32, i32
  }
  func.func @transform_4(%arg0: i32) -> (i32, i32) {
    %c0_i32 = arith.constant 0 : i32
    %c0_i32_0 = arith.constant 0 : i32
    %c0_i32_1 = arith.constant 0 : i32
    return %c0_i32, %c0_i32_0 : i32, i32
  }
  func.func @transform_5(%arg0: i32) -> (i32, i32) {
    %c0_i32 = arith.constant 0 : i32
    %c0_i32_0 = arith.constant 0 : i32
    %c0_i32_1 = arith.constant 0 : i32
    return %c0_i32, %c0_i32_0 : i32, i32
  }
  func.func @transform_6(%arg0: i32) -> (i32, i32) {
    %c0_i32 = arith.constant 0 : i32
    %c0_i32_0 = arith.constant 0 : i32
    %c0_i32_1 = arith.constant 0 : i32
    return %c0_i32, %c0_i32_0 : i32, i32
  }
  func.func @transform_7(%arg0: i32) -> (i32, i32) {
    %c0_i32 = arith.constant 0 : i32
    %c0_i32_0 = arith.constant 0 : i32
    %c0_i32_1 = arith.constant 0 : i32
    return %c0_i32, %c0_i32_0 : i32, i32
  }
  func.func @transform_8(%arg0: i32) -> (i32, i32) {
    %c0_i32 = arith.constant 0 : i32
    %c0_i32_0 = arith.constant 0 : i32
    %c0_i32_1 = arith.constant 0 : i32
    return %c0_i32, %c0_i32_0 : i32, i32
  }
  func.func @transform_9(%arg0: i32) -> (i32, i32) {
    %c0_i32 = arith.constant 0 : i32
    %c0_i32_0 = arith.constant 0 : i32
    return %arg0, %c0_i32 : i32, i32
  }
}

</mosaic_0001>

<llo_original>
// kernel: tpu_custom_call.1
$region0: #{tpu_custom_call.1}
  #allocation0 [shape = 'u32[]', space=smem, size = 0x4, offset = 0x4, fixed_abs, tag = 'smem constant byte address 0x4 - core index']
  #allocation1 [shape = 'u32[144,128]{1,0:T(1,128)}', space=vmem, size = 0x12000, scoped, tag = 'internal scratch']
  %s0 = inlined_call_operand.hbm [shape: f32[16,32], index: 0, kind: input, shape index: {}]
  %s1 = inlined_call_operand.hbm [shape: bf16[32,128], index: 1, kind: input, shape index: {}]
  %s2 = inlined_call_operand.vmem [shape: f32[1,128], index: 2, kind: input, shape index: {}]
  %s3 = inlined_call_operand.hbm [shape: bf16[128,256], index: 3, kind: input, shape index: {}]
  %s4 = inlined_call_operand.vmem [shape: f32[1,256], index: 4, kind: input, shape index: {}]
  %s5 = inlined_call_operand.hbm [shape: bf16[256,128], index: 5, kind: input, shape index: {}]
  %s6 = inlined_call_operand.vmem [shape: f32[1,128], index: 6, kind: input, shape index: {}]
  %s7 = inlined_call_operand.hbm [shape: bf16[128,128], index: 7, kind: input, shape index: {}]
  %s8 = inlined_call_operand.vmem [shape: f32[1,128], index: 8, kind: input, shape index: {}]
  %s9 = inlined_call_operand.hbm [shape: f32[16,128], index: 9, kind: output, shape index: {}]
  %s10 = sld [smem:[#allocation0]]
  $region66: #{tpu_custom_call.1} parent=0
    _
  %s12 = ssub.s32 1, %s10
  %s13 = scalar_select 0, %s12, %s10
  $region1: #{tpu_custom_call.1} parent=0
    #allocation2 [shape = 'u8[8192]{0}', space=vmem, size = 0x2000, scoped, tag = 'input window, operand 0, single buffered']
    #allocation3 [shape = 's32[1]{0}', space=sflag, size = 0x4, scoped, tag = 'scoped memory for tpu_custom_call.1']
    #allocation4 [shape = 's32[1]{0}', space=sflag, size = 0x4, scoped, tag = 'scoped memory for tpu_custom_call.1']
    #allocation5 [shape = 'u8[8192]{0}', space=vmem, size = 0x2000, scoped, tag = 'input window, operand 1, single buffered']
    #allocation6 [shape = 's32[1]{0}', space=sflag, size = 0x4, scoped, tag = 'scoped memory for tpu_custom_call.1']
    #allocation7 [shape = 'u8[65536]{0}', space=vmem, size = 0x10000, scoped, tag = 'input window, operand 3, single buffered']
    #allocation8 [shape = 'u8[65536]{0}', space=vmem, size = 0x10000, scoped, tag = 'input window, operand 5, single buffered']
    #allocation9 [shape = 's32[1]{0}', space=sflag, size = 0x4, scoped, tag = 'scoped memory for tpu_custom_call.1']
    #allocation10 [shape = 'u8[32768]{0}', space=vmem, size = 0x8000, scoped, tag = 'input window, operand 7, single buffered']
    #allocation11 [shape = 'u8[8192]{0}', space=vmem, size = 0x2000, scoped, tag = 'output window, operand 0, single buffered']
    %14 = vsyncpa [#allocation3], 0
    %15 = vsyncpa [#allocation6], 0
    %16 = vsyncpa [#allocation9], 0
    %17 = vsyncpa [#allocation4], 0
    // Predicated region
    $region2: #{tpu_custom_call.1} parent=1 // pred_check
      _
    $region3: #{tpu_custom_call.1} parent=1 // pred_check_branch
      %19 = sbr.rel (0) target = $region5
    $region4: #{tpu_custom_call.1} parent=1 // pred_region
      %s21 = ssub.s32 256, 256
      %22 = vsyncadd [#allocation3], %s21
      %s23 = sshll.u32 [#allocation2], 4
      %s24 = int_to_ptr.vmem [resolvable:$true] %s23
      %29 = dma.hbm_to_vmem [thread:$0]  %s0, 256, %s24, [#allocation3], 128, 128, 8
    $region5: #{tpu_custom_call.1} parent=1 // pred_fallthru
      _
    // Predicated region
    $region6: #{tpu_custom_call.1} parent=1 // pred_check
      _
    $region7: #{tpu_custom_call.1} parent=1 // pred_check_branch
      %31 = sbr.rel (0) target = $region9
    $region8: #{tpu_custom_call.1} parent=1 // pred_region
      %s33 = ssub.s32 256, 256
      %34 = vsyncadd [#allocation6], %s33
      %s35 = sshll.u32 [#allocation5], 4
      %s36 = int_to_ptr.vmem [resolvable:$true] %s35
      %41 = dma.hbm_to_vmem [thread:$0]  %s1, 256, %s36, [#allocation6], 64, 64, 4
    $region9: #{tpu_custom_call.1} parent=1 // pred_fallthru
      _
    // Predicated region
    $region10: #{tpu_custom_call.1} parent=1 // pred_check
      _
    $region11: #{tpu_custom_call.1} parent=1 // pred_check_branch
      %43 = sbr.rel (0) target = $region13
    $region12: #{tpu_custom_call.1} parent=1 // pred_region
      _
    $region13: #{tpu_custom_call.1} parent=1 // pred_fallthru
      _
    // Predicated region
    $region14: #{tpu_custom_call.1} parent=1 // pred_check
      _
    $region15: #{tpu_custom_call.1} parent=1 // pred_check_branch
      %45 = sbr.rel (0) target = $region17
    $region16: #{tpu_custom_call.1} parent=1 // pred_region
      %s47 = ssub.s32 2048, 2048
      %48 = vsyncadd [#allocation6], %s47
      %s49 = sshll.u32 [#allocation7], 4
      %s50 = int_to_ptr.vmem [resolvable:$true] %s49
      %55 = dma.hbm_to_vmem [thread:$0]  %s3, 2048, %s50, [#allocation6], 128, 128, 8
    $region17: #{tpu_custom_call.1} parent=1 // pred_fallthru
      _
    // Predicated region
    $region18: #{tpu_custom_call.1} parent=1 // pred_check
      _
    $region19: #{tpu_custom_call.1} parent=1 // pred_check_branch
      %57 = sbr.rel (0) target = $region21
    $region20: #{tpu_custom_call.1} parent=1 // pred_region
      _
    $region21: #{tpu_custom_call.1} parent=1 // pred_fallthru
      _
    // Predicated region
    $region22: #{tpu_custom_call.1} parent=1 // pred_check
      _
    $region23: #{tpu_custom_call.1} parent=1 // pred_check_branch
      %59 = sbr.rel (0) target = $region25
    $region24: #{tpu_custom_call.1} parent=1 // pred_region
      %s61 = ssub.s32 2048, 2048
      %62 = vsyncadd [#allocation9], %s61
      %s63 = sshll.u32 [#allocation8], 4
      %s64 = int_to_ptr.vmem [resolvable:$true] %s63
      %69 = dma.hbm_to_vmem [thread:$0]  %s5, 2048, %s64, [#allocation9], 64, 64, 4
    $region25: #{tpu_custom_call.1} parent=1 // pred_fallthru
      _
    // Predicated region
    $region26: #{tpu_custom_call.1} parent=1 // pred_check
      _
    $region27: #{tpu_custom_call.1} parent=1 // pred_check_branch
      %71 = sbr.rel (0) target = $region29
    $region28: #{tpu_custom_call.1} parent=1 // pred_region
      _
    $region29: #{tpu_custom_call.1} parent=1 // pred_fallthru
      _
    // Predicated region
    $region30: #{tpu_custom_call.1} parent=1 // pred_check
      _
    $region31: #{tpu_custom_call.1} parent=1 // pred_check_branch
      %73 = sbr.rel (0) target = $region33
    $region32: #{tpu_custom_call.1} parent=1 // pred_region
      %s75 = ssub.s32 1024, 1024
      %76 = vsyncadd [#allocation9], %s75
      %s77 = sshll.u32 [#allocation10], 4
      %s78 = int_to_ptr.vmem [resolvable:$true] %s77
      %83 = dma.hbm_to_vmem [thread:$0]  %s7, 1024, %s78, [#allocation9], 64, 64, 4
    $region33: #{tpu_custom_call.1} parent=1 // pred_fallthru
      _
    // Predicated region
    $region34: #{tpu_custom_call.1} parent=1 // pred_check
      _
    $region35: #{tpu_custom_call.1} parent=1 // pred_check_branch
      %85 = sbr.rel (0) target = $region37
    $region36: #{tpu_custom_call.1} parent=1 // pred_region
      _
    $region37: #{tpu_custom_call.1} parent=1 // pred_fallthru
      _
    // Predicated region
    $region38: #{tpu_custom_call.1} parent=1 // pred_check
      _
    $region39: #{tpu_custom_call.1} parent=1 // pred_check_branch
      %87 = sbr.rel (0) target = $region41
    $region40: #{tpu_custom_call.1} parent=1 // pred_region
      %88 = dma.done [#allocation3], 256
    $region41: #{tpu_custom_call.1} parent=1 // pred_fallthru
      _
    // Predicated region
    $region42: #{tpu_custom_call.1} parent=1 // pred_check
      _
    $region43: #{tpu_custom_call.1} parent=1 // pred_check_branch
      %90 = sbr.rel (0) target = $region45
    $region44: #{tpu_custom_call.1} parent=1 // pred_region
      %91 = dma.done [#allocation6], 256
    $region45: #{tpu_custom_call.1} parent=1 // pred_fallthru
      _
    // Predicated region
    $region46: #{tpu_custom_call.1} parent=1 // pred_check
      _
    $region47: #{tpu_custom_call.1} parent=1 // pred_check_branch
      %93 = sbr.rel (0) target = $region49
    $region48: #{tpu_custom_call.1} parent=1 // pred_region
      %94 = dma.done [#allocation6], 2048
    $region49: #{tpu_custom_call.1} parent=1 // pred_fallthru
      _
    // Predicated region
    $region50: #{tpu_custom_call.1} parent=1 // pred_check
      _
    $region51: #{tpu_custom_call.1} parent=1 // pred_check_branch
      %96 = sbr.rel (0) target = $region53
    $region52: #{tpu_custom_call.1} parent=1 // pred_region
      %97 = dma.done [#allocation9], 2048
    $region53: #{tpu_custom_call.1} parent=1 // pred_fallthru
      _
    // Predicated region
    $region54: #{tpu_custom_call.1} parent=1 // pred_check
      _
    $region55: #{tpu_custom_call.1} parent=1 // pred_check_branch
      %99 = sbr.rel (0) target = $region57
    $region56: #{tpu_custom_call.1} parent=1 // pred_region
      %100 = dma.done [#allocation9], 1024
    $region57: #{tpu_custom_call.1} parent=1 // pred_fallthru
      _
    %v102 = vld [vmem:[#allocation2] sm:$0xff]
    %v103 = vld [vmem:[#allocation2 + $0x8] sm:$0xff]
    %v104 = vpack.c.bf16 %v103, %v102
    %v105 = vld [vmem:[#allocation5] sm:$0xf]
    %v106 = vld [vmem:[#allocation5 + $0x4] sm:$0xf]
    %v107 = vld [vmem:[#allocation5 + $0x8] sm:$0xf]
    %v108 = vld [vmem:[#allocation5 + $0xc] sm:$0xf]
    %v109 = vld [vmem:[%s2] sm:$0x1]
    %v111 = vlaneseq
    %v112 = vshrl.u32 %v111, 7
    %v113 = vsub.s32 0, %v112
    %v114 = vrot.slane %v109, %v113
    %v120 = vunpack.c.l.b16 %v105
    %v121 = vunpack.c.l.b16 %v106
    %v122 = vunpack.c.l.b16 %v107
    %v123 = vunpack.c.l.b16 %v108
    %v124 = vpack.c.b16 %v121, %v120
    %v125 = vpack.c.b16 %v123, %v122
    %vm128 = vcmask 261120
    %v130 = vsel %vm128, %v104, 0
    %132 = vmatprep.subr.bf16.mxu0 0
    %133 = vmatpush1.bf16.msra.mxu0 %v124
    %134 = vmatprep.subr.bf16.mxu0 0
    %135 = vmatpush1.bf16.msra.mxu0 %v125
    %136 = vmatprep.subr.bf16.mxu0 0
    %137 = vmatpush1.bf16.msra.mxu0 0
    %138 = vmatprep.subr.bf16.mxu0 0
    %139 = vmatpush1.bf16.msra.mxu0 0
    %140 = vmatprep.subr.bf16.mxu0 0
    %141 = vmatpush1.bf16.msra.mxu0 0
    %142 = vmatprep.subr.bf16.mxu0 0
    %143 = vmatpush1.bf16.msra.mxu0 0
    %144 = vmatprep.subr.bf16.mxu0 0
    %145 = vmatpush1.bf16.msra.mxu0 0
    %146 = vmatprep.subr.bf16.mxu0 0
    %147 = vmatpush1.bf16.msra.mxu0 0
    %148 = vmatprep.subr.bf16.mxu0 0
    %149 = vmatpush1.bf16.msra.mxu0 0
    %150 = vmatprep.subr.bf16.mxu0 0
    %151 = vmatpush1.bf16.msra.mxu0 0
    %152 = vmatprep.subr.bf16.mxu0 0
    %153 = vmatpush1.bf16.msra.mxu0 0
    %154 = vmatprep.subr.bf16.mxu0 0
    %155 = vmatpush1.bf16.msra.mxu0 0
    %156 = vmatprep.subr.bf16.mxu0 0
    %157 = vmatpush1.bf16.msra.mxu0 0
    %158 = vmatprep.subr.bf16.mxu0 0
    %159 = vmatpush1.bf16.msra.mxu0 0
    %160 = vmatprep.subr.bf16.mxu0 0
    %161 = vmatpush1.bf16.msra.mxu0 0
    %162 = vmatprep.subr.bf16.mxu0 0
    %163 = vmatpush1.bf16.msra.mxu0 0
    %164 = vmatprep.mubr.bf16.mxu0 0
    %165 = vmatmul.mubr.bf16.gmra.mrb[0].mxu0 %v130
    %v166 = vpop.f32.mrb[0].mxu0
    %v167 = vadd.f32 %v114, %v166
    %v168 = vpop.f32.mrb[0].mxu0
    %v169 = vpop.f32.mrb[0].mxu0
    %v170 = vadd.f32 %v114, %v169
    %v171 = vpop.f32.mrb[0].mxu0
    %172 = vdwg.mxu0
    %v173 = vmax.f32 %v167, 0.0
    %v174 = vmax.f32 %v170, 0.0
    %v175 = vpack.c.bf16 %v174, %v173
    %v176 = vld [vmem:[#allocation7] sm:$0xff]
    %v177 = vld [vmem:[#allocation7 + $0x8] sm:$0xff]
    %v178 = vld [vmem:[#allocation7 + $0x10] sm:$0xff]
    %v179 = vld [vmem:[#allocation7 + $0x18] sm:$0xff]
    %v180 = vld [vmem:[#allocation7 + $0x20] sm:$0xff]
    %v181 = vld [vmem:[#allocation7 + $0x28] sm:$0xff]
    %v182 = vld [vmem:[#allocation7 + $0x30] sm:$0xff]
    %v183 = vld [vmem:[#allocation7 + $0x38] sm:$0xff]
    %v184 = vld [vmem:[#allocation7 + $0x40] sm:$0xff]
    %v185 = vld [vmem:[#allocation7 + $0x48] sm:$0xff]
    %v186 = vld [vmem:[#allocation7 + $0x50] sm:$0xff]
    %v187 = vld [vmem:[#allocation7 + $0x58] sm:$0xff]
    %v188 = vld [vmem:[#allocation7 + $0x60] sm:$0xff]
    %v189 = vld [vmem:[#allocation7 + $0x68] sm:$0xff]
    %v190 = vld [vmem:[#allocation7 + $0x70] sm:$0xff]
    %v191 = vld [vmem:[#allocation7 + $0x78] sm:$0xff]
    %v192 = vld [vmem:[%s4] sm:$0x3]
    %v194 = vlaneseq
    %v195 = vshrl.u32 %v194, 7
    %v196 = vsub.s32 0, %v195
    %v197 = vrot.slane %v192, %v196
    %v198 = vlaneseq
    %v199 = vshrl.u32 %v198, 7
    %v200 = vsub.s32 1, %v199
    %v201 = vrot.slane %v192, %v200
    %v220 = vunpack.c.l.b16 %v176
    %v221 = vunpack.c.h.b16 %v176
    %v222 = vunpack.c.l.b16 %v177
    %v223 = vunpack.c.h.b16 %v177
    %v224 = vunpack.c.l.b16 %v178
    %v225 = vunpack.c.h.b16 %v178
    %v226 = vunpack.c.l.b16 %v179
    %v227 = vunpack.c.h.b16 %v179
    %v228 = vunpack.c.l.b16 %v180
    %v229 = vunpack.c.h.b16 %v180
    %v230 = vunpack.c.l.b16 %v181
    %v231 = vunpack.c.h.b16 %v181
    %v232 = vunpack.c.l.b16 %v182
    %v233 = vunpack.c.h.b16 %v182
    %v234 = vunpack.c.l.b16 %v183
    %v235 = vunpack.c.h.b16 %v183
    %v236 = vunpack.c.l.b16 %v184
    %v237 = vunpack.c.h.b16 %v184
    %v238 = vunpack.c.l.b16 %v185
    %v239 = vunpack.c.h.b16 %v185
    %v240 = vunpack.c.l.b16 %v186
    %v241 = vunpack.c.h.b16 %v186
    %v242 = vunpack.c.l.b16 %v187
    %v243 = vunpack.c.h.b16 %v187
    %v244 = vunpack.c.l.b16 %v188
    %v245 = vunpack.c.h.b16 %v188
    %v246 = vunpack.c.l.b16 %v189
    %v247 = vunpack.c.h.b16 %v189
    %v248 = vunpack.c.l.b16 %v190
    %v249 = vunpack.c.h.b16 %v190
    %v250 = vunpack.c.l.b16 %v191
    %v251 = vunpack.c.h.b16 %v191
    %v252 = vpack.c.b16 %v222, %v220
    %v253 = vpack.c.b16 %v223, %v221
    %v254 = vpack.c.b16 %v226, %v224
    %v255 = vpack.c.b16 %v227, %v225
    %v256 = vpack.c.b16 %v230, %v228
    %v257 = vpack.c.b16 %v231, %v229
    %v258 = vpack.c.b16 %v234, %v232
    %v259 = vpack.c.b16 %v235, %v233
    %v260 = vpack.c.b16 %v238, %v236
    %v261 = vpack.c.b16 %v239, %v237
    %v262 = vpack.c.b16 %v242, %v240
    %v263 = vpack.c.b16 %v243, %v241
    %v264 = vpack.c.b16 %v246, %v244
    %v265 = vpack.c.b16 %v247, %v245
    %v266 = vpack.c.b16 %v250, %v248
    %v267 = vpack.c.b16 %v251, %v249
    %284 = vmatprep.subr.bf16.mxu0 %v253
    %285 = vmatpush1.bf16.msra.mxu0 %v252
    %286 = vmatprep.subr.bf16.mxu0 %v255
    %287 = vmatpush1.bf16.msra.mxu0 %v254
    %288 = vmatprep.subr.bf16.mxu0 %v257
    %289 = vmatpush1.bf16.msra.mxu0 %v256
    %290 = vmatprep.subr.bf16.mxu0 %v259
    %291 = vmatpush1.bf16.msra.mxu0 %v258
    %292 = vmatprep.subr.bf16.mxu0 %v261
    %293 = vmatpush1.bf16.msra.mxu0 %v260
    %294 = vmatprep.subr.bf16.mxu0 %v263
    %295 = vmatpush1.bf16.msra.mxu0 %v262
    %296 = vmatprep.subr.bf16.mxu0 %v265
    %297 = vmatpush1.bf16.msra.mxu0 %v264
    %298 = vmatprep.subr.bf16.mxu0 %v267
    %299 = vmatpush1.bf16.msra.mxu0 %v266
    %300 = vmatprep.subr.bf16.mxu0 0
    %301 = vmatpush1.bf16.msra.mxu0 0
    %302 = vmatprep.subr.bf16.mxu0 0
    %303 = vmatpush1.bf16.msra.mxu0 0
    %304 = vmatprep.subr.bf16.mxu0 0
    %305 = vmatpush1.bf16.msra.mxu0 0
    %306 = vmatprep.subr.bf16.mxu0 0
    %307 = vmatpush1.bf16.msra.mxu0 0
    %308 = vmatprep.subr.bf16.mxu0 0
    %309 = vmatpush1.bf16.msra.mxu0 0
    %310 = vmatprep.subr.bf16.mxu0 0
    %311 = vmatpush1.bf16.msra.mxu0 0
    %312 = vmatprep.subr.bf16.mxu0 0
    %313 = vmatpush1.bf16.msra.mxu0 0
    %314 = vmatprep.subr.bf16.mxu0 0
    %315 = vmatpush1.bf16.msra.mxu0 0
    %316 = vmatprep.mubr.bf16.mxu0 0
    %317 = vmatmul.mubr.bf16.gmra.mrb[0].mxu0 %v175
    %v318 = vpop.f32.mrb[0].mxu0
    %v319 = vadd.f32 %v197, %v318
    %v320 = vpop.f32.mrb[0].mxu0
    %v321 = vadd.f32 %v201, %v320
    %v322 = vpop.f32.mrb[0].mxu0
    %v323 = vadd.f32 %v197, %v322
    %v324 = vpop.f32.mrb[0].mxu0
    %v325 = vadd.f32 %v201, %v324
    %326 = vdwg.mxu0
    %v327 = vmax.f32 %v319, 0.0
    %v328 = vmax.f32 %v321, 0.0
    %v329 = vmax.f32 %v323, 0.0
    %v330 = vmax.f32 %v325, 0.0
    %v331 = vpack.c.bf16 %v329, %v327
    %v332 = vpack.c.bf16 %v330, %v328
    %v333 = vld [vmem:[#allocation8] sm:$0xf]
    %v334 = vld [vmem:[#allocation8 + $0x4] sm:$0xf]
    %v335 = vld [vmem:[#allocation8 + $0x8] sm:$0xf]
    %v336 = vld [vmem:[#allocation8 + $0xc] sm:$0xf]
    %v337 = vld [vmem:[#allocation8 + $0x10] sm:$0xf]
    %v338 = vld [vmem:[#allocation8 + $0x14] sm:$0xf]
    %v339 = vld [vmem:[#allocation8 + $0x18] sm:$0xf]
    %v340 = vld [vmem:[#allocation8 + $0x1c] sm:$0xf]
    %v341 = vld [vmem:[#allocation8 + $0x20] sm:$0xf]
    %v342 = vld [vmem:[#allocation8 + $0x24] sm:$0xf]
    %v343 = vld [vmem:[#allocation8 + $0x28] sm:$0xf]
    %v344 = vld [vmem:[#allocation8 + $0x2c] sm:$0xf]
    %v345 = vld [vmem:[#allocation8 + $0x30] sm:$0xf]
    %v346 = vld [vmem:[#allocation8 + $0x34] sm:$0xf]
    %v347 = vld [vmem:[#allocation8 + $0x38] sm:$0xf]
    %v348 = vld [vmem:[#allocation8 + $0x3c] sm:$0xf]
    %v349 = vld [vmem:[#allocation8 + $0x40] sm:$0xf]
    %v350 = vld [vmem:[#allocation8 + $0x44] sm:$0xf]
    %v351 = vld [vmem:[#allocation8 + $0x48] sm:$0xf]
    %v352 = vld [vmem:[#allocation8 + $0x4c] sm:$0xf]
    %v353 = vld [vmem:[#allocation8 + $0x50] sm:$0xf]
    %v354 = vld [vmem:[#allocation8 + $0x54] sm:$0xf]
    %v355 = vld [vmem:[#allocation8 + $0x58] sm:$0xf]
    %v356 = vld [vmem:[#allocation8 + $0x5c] sm:$0xf]
    %v357 = vld [vmem:[#allocation8 + $0x60] sm:$0xf]
    %v358 = vld [vmem:[#allocation8 + $0x64] sm:$0xf]
    %v359 = vld [vmem:[#allocation8 + $0x68] sm:$0xf]
    %v360 = vld [vmem:[#allocation8 + $0x6c] sm:$0xf]
    %v361 = vld [vmem:[#allocation8 + $0x70] sm:$0xf]
    %v362 = vld [vmem:[#allocation8 + $0x74] sm:$0xf]
    %v363 = vld [vmem:[#allocation8 + $0x78] sm:$0xf]
    %v364 = vld [vmem:[#allocation8 + $0x7c] sm:$0xf]
    %v365 = vld [vmem:[%s6] sm:$0x1]
    %v367 = vlaneseq
    %v368 = vshrl.u32 %v367, 7
    %v369 = vsub.s32 0, %v368
    %v370 = vrot.slane %v365, %v369
    %v404 = vunpack.c.l.b16 %v333
    %v405 = vunpack.c.l.b16 %v334
    %v406 = vunpack.c.l.b16 %v335
    %v407 = vunpack.c.l.b16 %v336
    %v408 = vunpack.c.l.b16 %v337
    %v409 = vunpack.c.l.b16 %v338
    %v410 = vunpack.c.l.b16 %v339
    %v411 = vunpack.c.l.b16 %v340
    %v412 = vunpack.c.l.b16 %v341
    %v413 = vunpack.c.l.b16 %v342
    %v414 = vunpack.c.l.b16 %v343
    %v415 = vunpack.c.l.b16 %v344
    %v416 = vunpack.c.l.b16 %v345
    %v417 = vunpack.c.l.b16 %v346
    %v418 = vunpack.c.l.b16 %v347
    %v419 = vunpack.c.l.b16 %v348
    %v420 = vunpack.c.l.b16 %v349
    %v421 = vunpack.c.l.b16 %v350
    %v422 = vunpack.c.l.b16 %v351
    %v423 = vunpack.c.l.b16 %v352
    %v424 = vunpack.c.l.b16 %v353
    %v425 = vunpack.c.l.b16 %v354
    %v426 = vunpack.c.l.b16 %v355
    %v427 = vunpack.c.l.b16 %v356
    %v428 = vunpack.c.l.b16 %v357
    %v429 = vunpack.c.l.b16 %v358
    %v430 = vunpack.c.l.b16 %v359
    %v431 = vunpack.c.l.b16 %v360
    %v432 = vunpack.c.l.b16 %v361
    %v433 = vunpack.c.l.b16 %v362
    %v434 = vunpack.c.l.b16 %v363
    %v435 = vunpack.c.l.b16 %v364
    %v436 = vpack.c.b16 %v405, %v404
    %v437 = vpack.c.b16 %v407, %v406
    %v438 = vpack.c.b16 %v409, %v408
    %v439 = vpack.c.b16 %v411, %v410
    %v440 = vpack.c.b16 %v413, %v412
    %v441 = vpack.c.b16 %v415, %v414
    %v442 = vpack.c.b16 %v417, %v416
    %v443 = vpack.c.b16 %v419, %v418
    %v444 = vpack.c.b16 %v421, %v420
    %v445 = vpack.c.b16 %v423, %v422
    %v446 = vpack.c.b16 %v425, %v424
    %v447 = vpack.c.b16 %v427, %v426
    %v448 = vpack.c.b16 %v429, %v428
    %v449 = vpack.c.b16 %v431, %v430
    %v450 = vpack.c.b16 %v433, %v432
    %v451 = vpack.c.b16 %v435, %v434
    %468 = vmatprep.subr.bf16.mxu0 0
    %469 = vmatpush1.bf16.msra.mxu0 %v436
    %470 = vmatprep.subr.bf16.mxu0 0
    %471 = vmatpush1.bf16.msra.mxu0 %v437
    %472 = vmatprep.subr.bf16.mxu0 0
    %473 = vmatpush1.bf16.msra.mxu0 %v438
    %474 = vmatprep.subr.bf16.mxu0 0
    %475 = vmatpush1.bf16.msra.mxu0 %v439
    %476 = vmatprep.subr.bf16.mxu0 0
    %477 = vmatpush1.bf16.msra.mxu0 %v440
    %478 = vmatprep.subr.bf16.mxu0 0
    %479 = vmatpush1.bf16.msra.mxu0 %v441
    %480 = vmatprep.subr.bf16.mxu0 0
    %481 = vmatpush1.bf16.msra.mxu0 %v442
    %482 = vmatprep.subr.bf16.mxu0 0
    %483 = vmatpush1.bf16.msra.mxu0 %v443
    %484 = vmatprep.subr.bf16.mxu0 0
    %485 = vmatpush1.bf16.msra.mxu0 %v444
    %486 = vmatprep.subr.bf16.mxu0 0
    %487 = vmatpush1.bf16.msra.mxu0 %v445
    %488 = vmatprep.subr.bf16.mxu0 0
    %489 = vmatpush1.bf16.msra.mxu0 %v446
    %490 = vmatprep.subr.bf16.mxu0 0
    %491 = vmatpush1.bf16.msra.mxu0 %v447
    %492 = vmatprep.subr.bf16.mxu0 0
    %493 = vmatpush1.bf16.msra.mxu0 %v448
    %494 = vmatprep.subr.bf16.mxu0 0
    %495 = vmatpush1.bf16.msra.mxu0 %v449
    %496 = vmatprep.subr.bf16.mxu0 0
    %497 = vmatpush1.bf16.msra.mxu0 %v450
    %498 = vmatprep.subr.bf16.mxu0 0
    %499 = vmatpush1.bf16.msra.mxu0 %v451
    %500 = vmatprep.mubr.bf16.mxu0 %v332
    %501 = vmatmul.mubr.bf16.gmra.mrb[0].mxu0 %v331
    %v502 = vpop.f32.mrb[0].mxu0
    %v503 = vadd.f32 %v370, %v502
    %v504 = vpop.f32.mrb[0].mxu0
    %v505 = vpop.f32.mrb[0].mxu0
    %v506 = vadd.f32 %v370, %v505
    %v507 = vpop.f32.mrb[0].mxu0
    %508 = vdwg.mxu0
    %v509 = vmax.f32 %v503, 0.0
    %v510 = vmax.f32 %v506, 0.0
    %v511 = vpack.c.bf16 %v510, %v509
    %v512 = vld [vmem:[#allocation10] sm:$0xf]
    %v513 = vld [vmem:[#allocation10 + $0x4] sm:$0xf]
    %v514 = vld [vmem:[#allocation10 + $0x8] sm:$0xf]
    %v515 = vld [vmem:[#allocation10 + $0xc] sm:$0xf]
    %v516 = vld [vmem:[#allocation10 + $0x10] sm:$0xf]
    %v517 = vld [vmem:[#allocation10 + $0x14] sm:$0xf]
    %v518 = vld [vmem:[#allocation10 + $0x18] sm:$0xf]
    %v519 = vld [vmem:[#allocation10 + $0x1c] sm:$0xf]
    %v520 = vld [vmem:[#allocation10 + $0x20] sm:$0xf]
    %v521 = vld [vmem:[#allocation10 + $0x24] sm:$0xf]
    %v522 = vld [vmem:[#allocation10 + $0x28] sm:$0xf]
    %v523 = vld [vmem:[#allocation10 + $0x2c] sm:$0xf]
    %v524 = vld [vmem:[#allocation10 + $0x30] sm:$0xf]
    %v525 = vld [vmem:[#allocation10 + $0x34] sm:$0xf]
    %v526 = vld [vmem:[#allocation10 + $0x38] sm:$0xf]
    %v527 = vld [vmem:[#allocation10 + $0x3c] sm:$0xf]
    %v528 = vld [vmem:[%s8] sm:$0x1]
    %v530 = vlaneseq
    %v531 = vshrl.u32 %v530, 7
    %v532 = vsub.s32 0, %v531
    %v533 = vrot.slane %v528, %v532
    %v551 = vunpack.c.l.b16 %v512
    %v552 = vunpack.c.l.b16 %v513
    %v553 = vunpack.c.l.b16 %v514
    %v554 = vunpack.c.l.b16 %v515
    %v555 = vunpack.c.l.b16 %v516
    %v556 = vunpack.c.l.b16 %v517
    %v557 = vunpack.c.l.b16 %v518
    %v558 = vunpack.c.l.b16 %v519
    %v559 = vunpack.c.l.b16 %v520
    %v560 = vunpack.c.l.b16 %v521
    %v561 = vunpack.c.l.b16 %v522
    %v562 = vunpack.c.l.b16 %v523
    %v563 = vunpack.c.l.b16 %v524
    %v564 = vunpack.c.l.b16 %v525
    %v565 = vunpack.c.l.b16 %v526
    %v566 = vunpack.c.l.b16 %v527
    %v567 = vpack.c.b16 %v552, %v551
    %v568 = vpack.c.b16 %v554, %v553
    %v569 = vpack.c.b16 %v556, %v555
    %v570 = vpack.c.b16 %v558, %v557
    %v571 = vpack.c.b16 %v560, %v559
    %v572 = vpack.c.b16 %v562, %v561
    %v573 = vpack.c.b16 %v564, %v563
    %v574 = vpack.c.b16 %v566, %v565
    %583 = vmatprep.subr.bf16.mxu0 0
    %584 = vmatpush1.bf16.msra.mxu0 %v567
    %585 = vmatprep.subr.bf16.mxu0 0
    %586 = vmatpush1.bf16.msra.mxu0 %v568
    %587 = vmatprep.subr.bf16.mxu0 0
    %588 = vmatpush1.bf16.msra.mxu0 %v569
    %589 = vmatprep.subr.bf16.mxu0 0
    %590 = vmatpush1.bf16.msra.mxu0 %v570
    %591 = vmatprep.subr.bf16.mxu0 0
    %592 = vmatpush1.bf16.msra.mxu0 %v571
    %593 = vmatprep.subr.bf16.mxu0 0
    %594 = vmatpush1.bf16.msra.mxu0 %v572
    %595 = vmatprep.subr.bf16.mxu0 0
    %596 = vmatpush1.bf16.msra.mxu0 %v573
    %597 = vmatprep.subr.bf16.mxu0 0
    %598 = vmatpush1.bf16.msra.mxu0 %v574
    %599 = vmatprep.subr.bf16.mxu0 0
    %600 = vmatpush1.bf16.msra.mxu0 0
    %601 = vmatprep.subr.bf16.mxu0 0
    %602 = vmatpush1.bf16.msra.mxu0 0
    %603 = vmatprep.subr.bf16.mxu0 0
    %604 = vmatpush1.bf16.msra.mxu0 0
    %605 = vmatprep.subr.bf16.mxu0 0
    %606 = vmatpush1.bf16.msra.mxu0 0
    %607 = vmatprep.subr.bf16.mxu0 0
    %608 = vmatpush1.bf16.msra.mxu0 0
    %609 = vmatprep.subr.bf16.mxu0 0
    %610 = vmatpush1.bf16.msra.mxu0 0
    %611 = vmatprep.subr.bf16.mxu0 0
    %612 = vmatpush1.bf16.msra.mxu0 0
    %613 = vmatprep.subr.bf16.mxu0 0
    %614 = vmatpush1.bf16.msra.mxu0 0
    %615 = vmatprep.mubr.bf16.mxu0 0
    %616 = vmatmul.mubr.bf16.gmra.mrb[0].mxu0 %v511
    %v617 = vpop.f32.mrb[0].mxu0
    %v618 = vadd.f32 %v533, %v617
    %v619 = vpop.f32.mrb[0].mxu0
    %v620 = vpop.f32.mrb[0].mxu0
    %v621 = vadd.f32 %v533, %v620
    %v622 = vpop.f32.mrb[0].mxu0
    %623 = vdwg.mxu0
    %624 = vst [vmem:[#allocation11] sm:$0xff] %v618
    %625 = vst [vmem:[#allocation11 + $0x8] sm:$0xff] %v621
    // Predicated region
    $region58: #{tpu_custom_call.1} parent=1 // pred_check
      _
    $region59: #{tpu_custom_call.1} parent=1 // pred_check_branch
      %627 = sbr.rel (0) target = $region61
    $region60: #{tpu_custom_call.1} parent=1 // pred_region
      %s629 = ssub.s32 256, 256
      %630 = vsyncadd [#allocation4], %s629
      %s631 = sshll.u32 [#allocation11], 4
      %s632 = int_to_ptr.vmem [resolvable:$true] %s631
      %637 = dma.vmem_to_hbm [thread:$0]  %s632, 256, %s9, [#allocation4], 128, 128, 8
    $region61: #{tpu_custom_call.1} parent=1 // pred_fallthru
      _
    // Predicated region
    $region62: #{tpu_custom_call.1} parent=1 // pred_check
      _
    $region63: #{tpu_custom_call.1} parent=1 // pred_check_branch
      %639 = sbr.rel (0) target = $region65
    $region64: #{tpu_custom_call.1} parent=1 // pred_region
      %640 = dma.done [#allocation4], 256
    $region65: #{tpu_custom_call.1} parent=1 // pred_fallthru
      _
    %641 = vsyncpa [#allocation3], 1
    %642 = vsyncpa [#allocation6], 1
    %643 = vsyncpa [#allocation9], 1
    %644 = vsyncpa [#allocation4], 1

</llo_original>
